<compile_context>
chip_gen: v5e
topology: v5e:2x2
jax: 0.10.0
libtpu: 0.0.40
codegen_flags: <defaults>
</compile_context>

<pallas_src>
import jax
import jax.numpy as jnp
from jax.experimental import pallas as pl
from jax.experimental.pallas import tpu as pltpu

LANE_W = 1024            # lane-dense last dim (multiple of 128) -> wide unmasked vst
TARGET_TILE_ROWS = 256   # ~1 MiB f32 per tile; safe for v5e/v6e/v7x default VMEM limits


def _round_up(n, m):
    return ((n + m - 1) // m) * m


# --------------- pass 1: per-tile partial min (fully parallel) ---------------
def _partial_min_kernel(x_ref, o_ref):
    tile_min = jnp.min(x_ref[...].astype(jnp.float32))
    o_ref[...] = jnp.broadcast_to(tile_min, o_ref.shape)


# --------------- pass 2: y = a + b * log(x - c_eff) --------------------------
def _powerlaw_kernel(a_ref, b_ref, c_ref, x_ref, o_ref):
    a = a_ref[0]
    b = b_ref[0]
    c_eff = c_ref[0]
    xf = x_ref[...].astype(jnp.float32)
    o_ref[...] = (a + b * jnp.log(xf - c_eff)).astype(o_ref.dtype)


# --------------------------------- wrapper -----------------------------------
def power_law_transform(x, a, b, c):
    orig_shape = x.shape
    orig_dtype = x.dtype
    total = x.size

    # Choose tiling: lane-dense slab (rows, LANE_W), tiles of (tile_rows, LANE_W).
    rows_needed = pl.cdiv(total, LANE_W)
    tile_rows = min(TARGET_TILE_ROWS, _round_up(rows_needed, 8))
    rows = _round_up(rows_needed, tile_rows)
    pad = rows * LANE_W - total

    xflat = x.reshape(-1)
    if pad:
        # +inf padding: neutral for the min pass; log(+inf)=+inf is sliced away.
        xflat = jnp.concatenate(
            [xflat, jnp.full((pad,), jnp.inf, dtype=orig_dtype)])
    x2 = xflat.reshape(rows, LANE_W)   # native dtype: no wrapper-side f32 copy

    num_tiles = rows // tile_rows
    grid = (num_tiles,)
    tile_spec = pl.BlockSpec((tile_rows, LANE_W), lambda i: (i, 0))

    # Pass 1: per-tile partial mins (parallel across grid / TensorCores).
    partial = pl.pallas_call(
        _partial_min_kernel,
        out_shape=jax.ShapeDtypeStruct((num_tiles * 8, 128), jnp.float32),
        grid=grid,
        in_specs=[tile_spec],
        out_specs=pl.BlockSpec((8, 128), lambda i: (i, 0)),
        compiler_params=pltpu.CompilerParams(
            dimension_semantics=("parallel",)),
    )(x2)
    xmin = jnp.min(partial)   # tiny XLA reduce over (num_tiles*8, 128)

    a1 = jnp.asarray(a, jnp.float32).reshape(1)
    b1 = jnp.asarray(b, jnp.float32).reshape(1)
    c1 = jnp.asarray(c, jnp.float32).reshape(1)
    c_eff = jnp.minimum(c1, xmin - 1e-6)   # torch.clamp(c, max=x.min()-1e-6)

    smem_spec = pl.BlockSpec(memory_space=pltpu.MemorySpace.SMEM)

    # Pass 2: streaming elementwise a + b * log(x - c_eff), native-dtype I/O.
    y2 = pl.pallas_call(
        _powerlaw_kernel,
        out_shape=jax.ShapeDtypeStruct((rows, LANE_W), orig_dtype),
        grid=grid,
        in_specs=[smem_spec, smem_spec, smem_spec, tile_spec],
        out_specs=tile_spec,
        compiler_params=pltpu.CompilerParams(
            dimension_semantics=("parallel",)),
    )(a1, b1, c_eff, x2)

    y = y2.reshape(-1)[:total].reshape(orig_shape)
    # TODO(synk): nn.Parameter in-place update (self.c.data = ...) has no Pallas
    # equivalent; the clamped c is returned so the caller can mirror it.
    c_new = c_eff.astype(jnp.asarray(c).dtype)
    return y, c_new


if __name__ == "__main__":
    key = jax.random.PRNGKey(0)
    ka, kb, kc, kx = jax.random.split(key, 4)

    # Parameter init matching the module's __init__ shapes:
    # a ~ randn(1), b ~ randn(1), c ~ rand(1)
    a = jax.random.normal(ka, (1,), jnp.float32)
    b = jax.random.normal(kb, (1,), jnp.float32)
    c = jax.random.uniform(kc, (1,), jnp.float32)

    # Small NCHW-shaped example input.
    x = jax.random.normal(kx, (2, 4, 16, 16), jnp.float32)

    y, c_new = power_law_transform(x, a, b, c)
    y = jax.block_until_ready(y)

    # Pure-JAX reference.
    c_ref = jnp.minimum(c, x.min() - 1e-6)
    y_ref = a + b * jnp.log(x - c_ref)
    assert jnp.allclose(y, y_ref, atol=1e-5, rtol=1e-5), "mismatch vs reference"
    assert jnp.allclose(c_new, c_ref, atol=1e-7, rtol=1e-7), "c clamp mismatch"

    print("KERNEL_OK")
</pallas_src>

<mosaic_0001>
module attributes {stable_mosaic.version = 11 : i64} {
  func.func @_partial_min_kernel(%arg0: i32, %arg1: memref<8x1024xf32, #tpu.memory_space<vmem>>, %arg2: memref<8x128xf32, #tpu.memory_space<vmem>>) attributes {dimension_semantics = [#tpu.dimension_semantics<parallel>], iteration_bounds = array<i64: 1>, scalar_prefetch = 0 : i64, scratch_operands = 0 : i64, tpu.core_type = #tpu.core_type<tc>, window_params = [{transform_indices = @transform_0, window_bounds = array<i64: 8, 1024>}, {transform_indices = @transform_1, window_bounds = array<i64: 8, 128>}]} {
    %c0 = arith.constant 0 : index
    %c0_0 = arith.constant 0 : index
    %0 = vector.load %arg1[%c0, %c0_0] : memref<8x1024xf32, #tpu.memory_space<vmem>>, vector<8x1024xf32>
    %1 = vector.shape_cast %0 : vector<8x1024xf32> to vector<1x8x1024xf32>
    %cst = arith.constant dense<0x7F800000> : vector<1xf32>
    %2 = vector.multi_reduction <minimumf>, %1, %cst [1, 2] : vector<1x8x1024xf32> to vector<1xf32>
    %3 = vector.shape_cast %2 : vector<1xf32> to vector<1x1x1xf32>
    %4 = vector.extract %3[0, 0, 0] : f32 from vector<1x1x1xf32>
    %5 = vector.broadcast %4 : f32 to vector<8x128xf32>
    %c0_1 = arith.constant 0 : index
    %c0_2 = arith.constant 0 : index
    %6 = vector.load %arg2[%c0_1, %c0_2] : memref<8x128xf32, #tpu.memory_space<vmem>>, vector<8x128xf32>
    tpu.vector_store %arg2[%c0_1, %c0_2], %5 {strides = array<i32>} : memref<8x128xf32, #tpu.memory_space<vmem>>, vector<8x128xf32>,
    return
  }
  func.func @transform_0(%arg0: i32) -> (i32, i32) {
    %c0_i32 = arith.constant 0 : i32
    %c0_i32_0 = arith.constant 0 : i32
    return %arg0, %c0_i32 : i32, i32
  }
  func.func @transform_1(%arg0: i32) -> (i32, i32) {
    %c0_i32 = arith.constant 0 : i32
    %c0_i32_0 = arith.constant 0 : i32
    return %arg0, %c0_i32 : i32, i32
  }
}

</mosaic_0001>

<llo_original>
// kernel: tpu_custom_call.1
$region0: #{tpu_custom_call.1}
  #allocation0 [shape = 'u32[]', space=smem, size = 0x4, offset = 0x4, fixed_abs, tag = 'smem constant byte address 0x4 - core index']
  #allocation1 [shape = 'u32[72,128]{1,0:T(1,128)}', space=vmem, size = 0x9000, scoped, tag = 'internal scratch']
  %s0 = inlined_call_operand.hbm [shape: f32[8,1024], index: 0, kind: input, shape index: {}]
  %s1 = inlined_call_operand.hbm [shape: f32[8,128], index: 1, kind: output, shape index: {}]
  %s2 = sld [smem:[#allocation0]]
  $region18: #{tpu_custom_call.1} parent=0
    _
  %s4 = ssub.s32 1, %s2
  %s5 = scalar_select 0, %s4, %s2
  $region1: #{tpu_custom_call.1} parent=0
    #allocation2 [shape = 'u8[32768]{0}', space=vmem, size = 0x8000, scoped, tag = 'input window, operand 0, single buffered']
    #allocation3 [shape = 's32[1]{0}', space=sflag, size = 0x4, scoped, tag = 'scoped memory for tpu_custom_call.1']
    #allocation4 [shape = 's32[1]{0}', space=sflag, size = 0x4, scoped, tag = 'scoped memory for tpu_custom_call.1']
    #allocation5 [shape = 'u8[4096]{0}', space=vmem, size = 0x1000, scoped, tag = 'output window, operand 0, single buffered']
    %6 = vsyncpa [#allocation3], 0
    %7 = vsyncpa [#allocation4], 0
    // Predicated region
    $region2: #{tpu_custom_call.1} parent=1 // pred_check
      _
    $region3: #{tpu_custom_call.1} parent=1 // pred_check_branch
      %9 = sbr.rel (0) target = $region5
    $region4: #{tpu_custom_call.1} parent=1 // pred_region
      %11 = vsyncadd [#allocation3], 0
      %s13 = sshll.u32 %s0, 4
      %s14 = int_to_ptr.hbm [resolvable:$true] %s13
      %s15 = sshll.u32 [#allocation2], 4
      %s16 = int_to_ptr.vmem [resolvable:$true] %s15
      %18 = dma.hbm_to_vmem [thread:$0]  %s14, 1024, %s16, [#allocation3]
    $region5: #{tpu_custom_call.1} parent=1 // pred_fallthru
      _
    // Predicated region
    $region6: #{tpu_custom_call.1} parent=1 // pred_check
      _
    $region7: #{tpu_custom_call.1} parent=1 // pred_check_branch
      %20 = sbr.rel (0) target = $region9
    $region8: #{tpu_custom_call.1} parent=1 // pred_region
      %22 = dma.done [#allocation3], 1024
    $region9: #{tpu_custom_call.1} parent=1 // pred_fallthru
      _
    %v23 = vld [vmem:[#allocation2] sm:$0xff]
    %v24 = vld [vmem:[#allocation2 + $0x8] sm:$0xff]
    %v25 = vld [vmem:[#allocation2 + $0x10] sm:$0xff]
    %v26 = vld [vmem:[#allocation2 + $0x18] sm:$0xff]
    %v27 = vld [vmem:[#allocation2 + $0x20] sm:$0xff]
    %v28 = vld [vmem:[#allocation2 + $0x28] sm:$0xff]
    %v29 = vld [vmem:[#allocation2 + $0x30] sm:$0xff]
    %v30 = vld [vmem:[#allocation2 + $0x38] sm:$0xff]
    %v31 = vmin.f32 %v23, %v27
    %v32 = vmin.f32 %v24, %v28
    %v33 = vmin.f32 %v25, %v29
    %v34 = vmin.f32 %v26, %v30
    %v35 = vmin.f32 %v31, %v32
    %v36 = vmin.f32 %v33, %v34
    %v37 = vmin.f32 %v35, %v36
    %38 = vmin.xlane.f32.xlu0 %v37
    %v39 = vpop.xlane.xlu0 %38
    %v40 = vrot.slane %v39, 4
    %v41 = vmin.f32 %v39, %v40
    %v42 = vrot.slane %v41, 2
    %v43 = vmin.f32 %v41, %v42
    %v44 = vrot.slane %v43, 1
    %v45 = vmin.f32 %v43, %v44
    %s46 = vtos %v45
    %v47 = vstv %s46
    %48 = vst [vmem:[#allocation5] sm:$0xff] %v47
    // Predicated region
    $region10: #{tpu_custom_call.1} parent=1 // pred_check
      _
    $region11: #{tpu_custom_call.1} parent=1 // pred_check_branch
      %50 = sbr.rel (0) target = $region13
    $region12: #{tpu_custom_call.1} parent=1 // pred_region
      %52 = vsyncadd [#allocation4], 0
      %s54 = sshll.u32 [#allocation5], 4
      %s55 = int_to_ptr.vmem [resolvable:$true] %s54
      %s56 = sshll.u32 %s1, 4
      %s57 = int_to_ptr.hbm [resolvable:$true] %s56
      %59 = dma.vmem_to_hbm [thread:$0]  %s55, 128, %s57, [#allocation4]
    $region13: #{tpu_custom_call.1} parent=1 // pred_fallthru
      _
    // Predicated region
    $region14: #{tpu_custom_call.1} parent=1 // pred_check
      _
    $region15: #{tpu_custom_call.1} parent=1 // pred_check_branch
      %61 = sbr.rel (0) target = $region17
    $region16: #{tpu_custom_call.1} parent=1 // pred_region
      %63 = dma.done [#allocation4], 128
    $region17: #{tpu_custom_call.1} parent=1 // pred_fallthru
      _
    %64 = vsyncpa [#allocation3], 1
    %65 = vsyncpa [#allocation4], 1

</llo_original>
